<compile_context>
chip_gen: v7x
topology: tpu7x:2x2x1
jax: 0.10.0
libtpu: 0.0.40
codegen_flags: <defaults>
</compile_context>

<pallas_src>
import functools

import jax
import jax.numpy as jnp
from jax import lax
from jax.experimental import pallas as pl
from jax.experimental.pallas import tpu as pltpu


def _round_up(x, m):
    return (x + m - 1) // m * m


def pack_conv_weight(w):
    """PyTorch Conv2d weight [Cout, Cin, 3, 3] -> [Cout, 9*Cin] bf16 (done once).

    The 9*Cin axis is tap-major (t = dh*3 + dw), matching the stacked rhs the
    kernel assembles in VMEM.
    """
    cout, cin, kh, kw = w.shape
    assert kh == 3 and kw == 3
    return jnp.transpose(w, (0, 2, 3, 1)).reshape(cout, 9 * cin).astype(jnp.bfloat16)


# ----------------------------------------------------------------------------
# Fused residual-block kernel (one batch sample per grid step)
# ----------------------------------------------------------------------------
def _resblock_kernel(x_ref, w1_ref, w2_ref, msk_ref, o_ref, slab_ref, st_ref,
                     *, W, d, slope, margin):
    """Refs:
    x_ref   : [1, C, HW]  f32  input, flattened row-major (no padding)
    w1_ref  : [C, 9*C]    bf16 prepacked conv1 weights (tap-major K)
    w2_ref  : [C, 9*C]    bf16 prepacked conv2 weights
    msk_ref : [2, Lq]     bf16 column-validity masks for taps dw=0 / dw=2
    o_ref   : [1, C, HW]  f32  output (x + block(x)), final layout
    slab_ref: [C, Ls]     bf16 scratch: margined slab (holds x, then conv1 act)
    st_ref  : [9*C, Lq]   bf16 scratch: stacked GEMM rhs
    """
    C = x_ref.shape[1]
    HW = x_ref.shape[2]
    Lq = st_ref.shape[1]
    Ls = slab_ref.shape[1]
    M = margin
    offs = [((dh - 1) * W + (dw - 1)) * d for dh in range(3) for dw in range(3)]

    def leaky(v):
        return jnp.where(v >= 0.0, v, slope * v)

    # Hoisted sublane broadcasts of the two column masks (reused by both convs).
    mask_l = jnp.broadcast_to(msk_ref[0:1, :], (C, Lq))   # tap column dw = 0
    mask_r = jnp.broadcast_to(msk_ref[1:2, :], (C, Lq))   # tap column dw = 2

    # Zero-fill ONLY the margin strips (left strip is a lane-aligned 128-wide
    # multiple).  Margins provide the conv's zero padding for row-overflow
    # taps; column-overflow taps are handled by the masks.
    slab_ref[:, 0:M] = jnp.zeros((C, M), jnp.bfloat16)
    slab_ref[:, M + HW:] = jnp.zeros((C, Ls - (M + HW)), jnp.bfloat16)

    # Cast x to bf16 exactly once -- single aligned full-width store.
    slab_ref[:, M:M + HW] = x_ref[0].astype(jnp.bfloat16)

    def conv3x3(w_ref):
        # Assemble the [9*C, Lq] stacked rhs: 9 lane-shifted (column-masked)
        # views of the slab, stored at sublane offsets t*C (aligned stores).
        for t, off in enumerate(offs):
            v = slab_ref[:, M + off:M + off + Lq]
            dw = t % 3
            if dw == 0:
                v = v * mask_l
            elif dw == 2:
                v = v * mask_r
            st_ref[t * C:(t + 1) * C, :] = v
        # One K = 9*C MXU matmul per conv (f32 accumulation inside the MXU).
        return jnp.dot(w_ref[...], st_ref[...],
                       preferred_element_type=jnp.float32)

    # ---- conv1 + LeakyReLU ----
    h1 = leaky(conv3x3(w1_ref))                      # [C, Lq] f32
    if Lq != HW:
        # Zero the lane-padding tail so conv2's row-overflow taps read zeros.
        lane = lax.broadcasted_iota(jnp.int32, (1, Lq), 1)
        h1 = jnp.where(lane < HW, h1, 0.0)
    # Re-embed into the same slab (margins are still zero) -- aligned store.
    slab_ref[:, M:M + Lq] = h1.astype(jnp.bfloat16)

    # ---- conv2 + LeakyReLU ----
    h2 = leaky(conv3x3(w2_ref))                      # [C, Lq] f32

    # ---- residual add: identity path stays exact f32; output in final layout.
    o_ref[0] = x_ref[0] + h2[:, :HW]


def residual_block_nonorm(x, w1_packed, w2_packed, *, dilation=1, slope=0.1):
    """x: [N, C, H, W] f32; w*_packed: [C, 9*C] bf16 (see pack_conv_weight)."""
    N, C, H, W = x.shape
    d = dilation
    HW = H * W
    Lq = _round_up(HW, 128)                 # GEMM lane width (output columns)
    M = _round_up(d * (W + 1), 128)         # aligned zero margin (>= max tap shift)
    Ls = M + Lq + M                         # slab width

    x_flat = x.reshape(N, C, HW)            # bitcast -- no HBM copy

    # Column-validity masks for the dw=0 / dw=2 taps (constant-folded by XLA).
    col = jnp.arange(Lq, dtype=jnp.int32) % W
    masks = jnp.stack([col >= d, col < W - d]).astype(jnp.bfloat16)   # [2, Lq]

    kernel = functools.partial(_resblock_kernel, W=W, d=d, slope=slope, margin=M)

    # VMEM residency estimate (double-buffered blocks + scratch + live f32
    # values), 2x headroom, 16 MiB floor -- well under v7x's 64 MiB.
    vmem_bytes = (4 * C * HW * 4            # x + out blocks (double-buffered)
                  + 4 * 9 * C * C * 2       # both weight blocks
                  + 4 * 2 * Lq * 2          # mask blocks
                  + C * Ls * 2              # slab scratch (bf16)
                  + 9 * C * Lq * 2          # stacked-rhs scratch (bf16)
                  + 8 * C * Lq * 4)         # live f32 accumulators / h1 / h2
    vmem_limit = int(min(max(2 * vmem_bytes, 16 * 1024 * 1024),
                         96 * 1024 * 1024))

    out_flat = pl.pallas_call(
        kernel,
        out_shape=jax.ShapeDtypeStruct((N, C, HW), jnp.float32),
        grid=(N,),                                    # one sample per step
        in_specs=[
            pl.BlockSpec((1, C, HW), lambda b: (b, 0, 0)),    # x (f32)
            pl.BlockSpec((C, 9 * C), lambda b: (0, 0)),       # conv1 weights
            pl.BlockSpec((C, 9 * C), lambda b: (0, 0)),       # conv2 weights
            pl.BlockSpec((2, Lq), lambda b: (0, 0)),          # column masks
        ],
        out_specs=pl.BlockSpec((1, C, HW), lambda b: (b, 0, 0)),
        scratch_shapes=[pltpu.VMEM((C, Ls), jnp.bfloat16),
                        pltpu.VMEM((9 * C, Lq), jnp.bfloat16)],
        compiler_params=pltpu.CompilerParams(
            dimension_semantics=("parallel",),        # megacore over batch
            vmem_limit_bytes=vmem_limit),
    )(x_flat, w1_packed, w2_packed, masks)

    return out_flat.reshape(N, C, H, W)


# ----------------------------------------------------------------------------
# Pure-JAX reference (mirrors the bf16 operand rounding used on the MXU)
# ----------------------------------------------------------------------------
def resblock_ref(x, w1, w2, *, dilation=1, slope=0.1):
    d = dilation

    def conv(a, w):
        return lax.conv_general_dilated(
            a, w, window_strides=(1, 1), padding=((d, d), (d, d)),
            rhs_dilation=(d, d), dimension_numbers=("NCHW", "OIHW", "NCHW"))

    def leaky(v):
        return jnp.where(v >= 0.0, v, slope * v)

    def bf(v):
        return v.astype(jnp.bfloat16).astype(jnp.float32)

    h = leaky(conv(bf(x), bf(w1)))
    h = leaky(conv(bf(h), bf(w2)))
    return x + h


if __name__ == "__main__":
    key = jax.random.PRNGKey(0)
    k1, k2, k3 = jax.random.split(key, 3)
    N, C, H, W = 2, 16, 16, 16                       # dim_in = 16, small config

    x = jax.random.normal(k1, (N, C, H, W), jnp.float32)
    std = (C * 3 * 3) ** -0.5
    w1 = std * jax.random.normal(k2, (C, C, 3, 3), jnp.float32)
    w2 = std * jax.random.normal(k3, (C, C, 3, 3), jnp.float32)

    # Prepack weights once (bf16, [Cout, 9*Cin]) -- not re-done per forward call.
    w1p = pack_conv_weight(w1)
    w2p = pack_conv_weight(w2)

    fwd = jax.jit(residual_block_nonorm)
    out = jax.block_until_ready(fwd(x, w1p, w2p))

    ref = jax.block_until_ready(resblock_ref(x, w1, w2))
    err = float(jnp.max(jnp.abs(out - ref)))

    assert out.shape == (N, C, H, W)
    assert out.dtype == jnp.float32
    assert err < 2e-2, f"max abs error vs reference: {err}"
    print("KERNEL_OK")
</pallas_src>

<mosaic_0001>
module attributes {stable_mosaic.version = 11 : i64} {
  func.func @_resblock_kernel(%arg0: i32, %arg1: memref<1x16x256xf32, #tpu.memory_space<vmem>>, %arg2: memref<16x144xbf16, #tpu.memory_space<vmem>>, %arg3: memref<16x144xbf16, #tpu.memory_space<vmem>>, %arg4: memref<2x256xbf16, #tpu.memory_space<vmem>>, %arg5: memref<1x16x256xf32, #tpu.memory_space<vmem>>, %arg6: memref<16x512xbf16, #tpu.memory_space<vmem>>, %arg7: memref<144x256xbf16, #tpu.memory_space<vmem>>) attributes {dimension_semantics = [#tpu.dimension_semantics<parallel>], iteration_bounds = array<i64: 2>, scalar_prefetch = 0 : i64, scratch_operands = 2 : i64, tpu.core_type = #tpu.core_type<tc>, window_params = [{transform_indices = @transform_0, window_bounds = array<i64: 1, 16, 256>}, {pipeline_mode = #tpu.pipeline_mode<synchronous>, transform_indices = @transform_1, window_bounds = array<i64: 16, 144>}, {pipeline_mode = #tpu.pipeline_mode<synchronous>, transform_indices = @transform_2, window_bounds = array<i64: 16, 144>}, {pipeline_mode = #tpu.pipeline_mode<synchronous>, transform_indices = @transform_3, window_bounds = array<i64: 2, 256>}, {transform_indices = @transform_4, window_bounds = array<i64: 1, 16, 256>}]} {
    %c0 = arith.constant 0 : index
    %c0_0 = arith.constant 0 : index
    %0 = vector.load %arg4[%c0, %c0_0] : memref<2x256xbf16, #tpu.memory_space<vmem>>, vector<1x256xbf16>
    %1 = vector.shape_cast %0 : vector<1x256xbf16> to vector<1x256xbf16>
    %2 = vector.broadcast %1 : vector<1x256xbf16> to vector<16x256xbf16>
    %c1 = arith.constant 1 : index
    %c0_1 = arith.constant 0 : index
    %3 = vector.load %arg4[%c1, %c0_1] : memref<2x256xbf16, #tpu.memory_space<vmem>>, vector<1x256xbf16>
    %4 = vector.shape_cast %3 : vector<1x256xbf16> to vector<1x256xbf16>
    %5 = vector.broadcast %4 : vector<1x256xbf16> to vector<16x256xbf16>
    %cst = arith.constant 0.000000e+00 : bf16
    %6 = vector.broadcast %cst : bf16 to vector<16x128xbf16>
    %c0_2 = arith.constant 0 : index
    %c0_3 = arith.constant 0 : index
    %7 = vector.load %arg6[%c0_2, %c0_3] : memref<16x512xbf16, #tpu.memory_space<vmem>>, vector<16x128xbf16>
    tpu.vector_store %arg6[%c0_2, %c0_3], %6 {strides = array<i32>} : memref<16x512xbf16, #tpu.memory_space<vmem>>, vector<16x128xbf16>,
    %cst_4 = arith.constant 0.000000e+00 : bf16
    %8 = vector.broadcast %cst_4 : bf16 to vector<16x128xbf16>
    %c0_5 = arith.constant 0 : index
    %c384 = arith.constant 384 : index
    %9 = vector.load %arg6[%c0_5, %c384] : memref<16x512xbf16, #tpu.memory_space<vmem>>, vector<16x128xbf16>
    tpu.vector_store %arg6[%c0_5, %c384], %8 {strides = array<i32>} : memref<16x512xbf16, #tpu.memory_space<vmem>>, vector<16x128xbf16>,
    %c0_6 = arith.constant 0 : index
    %c0_7 = arith.constant 0 : index
    %c0_8 = arith.constant 0 : index
    %10 = vector.load %arg1[%c0_6, %c0_7, %c0_8] : memref<1x16x256xf32, #tpu.memory_space<vmem>>, vector<1x16x256xf32>
    %11 = vector.shape_cast %10 : vector<1x16x256xf32> to vector<16x256xf32>
    %12 = arith.truncf %11 : vector<16x256xf32> to vector<16x256xbf16>
    %c0_9 = arith.constant 0 : index
    %c128 = arith.constant 128 : index
    %13 = vector.load %arg6[%c0_9, %c128] : memref<16x512xbf16, #tpu.memory_space<vmem>>, vector<16x256xbf16>
    tpu.vector_store %arg6[%c0_9, %c128], %12 {strides = array<i32>} : memref<16x512xbf16, #tpu.memory_space<vmem>>, vector<16x256xbf16>,
    %c0_10 = arith.constant 0 : index
    %c111 = arith.constant 111 : index
    %14 = vector.load %arg6[%c0_10, %c111] : memref<16x512xbf16, #tpu.memory_space<vmem>>, vector<16x256xbf16>
    %15 = arith.mulf %14, %2 : vector<16x256xbf16>
    %c0_11 = arith.constant 0 : index
    %c0_12 = arith.constant 0 : index
    %16 = vector.load %arg7[%c0_11, %c0_12] : memref<144x256xbf16, #tpu.memory_space<vmem>>, vector<16x256xbf16>
    tpu.vector_store %arg7[%c0_11, %c0_12], %15 {strides = array<i32>} : memref<144x256xbf16, #tpu.memory_space<vmem>>, vector<16x256xbf16>,
    %c0_13 = arith.constant 0 : index
    %c112 = arith.constant 112 : index
    %17 = vector.load %arg6[%c0_13, %c112] : memref<16x512xbf16, #tpu.memory_space<vmem>>, vector<16x256xbf16>
    %c16 = arith.constant 16 : index
    %c0_14 = arith.constant 0 : index
    %18 = vector.load %arg7[%c16, %c0_14] : memref<144x256xbf16, #tpu.memory_space<vmem>>, vector<16x256xbf16>
    tpu.vector_store %arg7[%c16, %c0_14], %17 {strides = array<i32>} : memref<144x256xbf16, #tpu.memory_space<vmem>>, vector<16x256xbf16>,
    %c0_15 = arith.constant 0 : index
    %c113 = arith.constant 113 : index
    %19 = vector.load %arg6[%c0_15, %c113] : memref<16x512xbf16, #tpu.memory_space<vmem>>, vector<16x256xbf16>
    %20 = arith.mulf %19, %5 : vector<16x256xbf16>
    %c32 = arith.constant 32 : index
    %c0_16 = arith.constant 0 : index
    %21 = vector.load %arg7[%c32, %c0_16] : memref<144x256xbf16, #tpu.memory_space<vmem>>, vector<16x256xbf16>
    tpu.vector_store %arg7[%c32, %c0_16], %20 {strides = array<i32>} : memref<144x256xbf16, #tpu.memory_space<vmem>>, vector<16x256xbf16>,
    %c0_17 = arith.constant 0 : index
    %c127 = arith.constant 127 : index
    %22 = vector.load %arg6[%c0_17, %c127] : memref<16x512xbf16, #tpu.memory_space<vmem>>, vector<16x256xbf16>
    %23 = arith.mulf %22, %2 : vector<16x256xbf16>
    %c48 = arith.constant 48 : index
    %c0_18 = arith.constant 0 : index
    %24 = vector.load %arg7[%c48, %c0_18] : memref<144x256xbf16, #tpu.memory_space<vmem>>, vector<16x256xbf16>
    tpu.vector_store %arg7[%c48, %c0_18], %23 {strides = array<i32>} : memref<144x256xbf16, #tpu.memory_space<vmem>>, vector<16x256xbf16>,
    %c0_19 = arith.constant 0 : index
    %c128_20 = arith.constant 128 : index
    %25 = vector.load %arg6[%c0_19, %c128_20] : memref<16x512xbf16, #tpu.memory_space<vmem>>, vector<16x256xbf16>
    %c64 = arith.constant 64 : index
    %c0_21 = arith.constant 0 : index
    %26 = vector.load %arg7[%c64, %c0_21] : memref<144x256xbf16, #tpu.memory_space<vmem>>, vector<16x256xbf16>
    tpu.vector_store %arg7[%c64, %c0_21], %25 {strides = array<i32>} : memref<144x256xbf16, #tpu.memory_space<vmem>>, vector<16x256xbf16>,
    %c0_22 = arith.constant 0 : index
    %c129 = arith.constant 129 : index
    %27 = vector.load %arg6[%c0_22, %c129] : memref<16x512xbf16, #tpu.memory_space<vmem>>, vector<16x256xbf16>
    %28 = arith.mulf %27, %5 : vector<16x256xbf16>
    %c80 = arith.constant 80 : index
    %c0_23 = arith.constant 0 : index
    %29 = vector.load %arg7[%c80, %c0_23] : memref<144x256xbf16, #tpu.memory_space<vmem>>, vector<16x256xbf16>
    tpu.vector_store %arg7[%c80, %c0_23], %28 {strides = array<i32>} : memref<144x256xbf16, #tpu.memory_space<vmem>>, vector<16x256xbf16>,
    %c0_24 = arith.constant 0 : index
    %c143 = arith.constant 143 : index
    %30 = vector.load %arg6[%c0_24, %c143] : memref<16x512xbf16, #tpu.memory_space<vmem>>, vector<16x256xbf16>
    %31 = arith.mulf %30, %2 : vector<16x256xbf16>
    %c96 = arith.constant 96 : index
    %c0_25 = arith.constant 0 : index
    %32 = vector.load %arg7[%c96, %c0_25] : memref<144x256xbf16, #tpu.memory_space<vmem>>, vector<16x256xbf16>
    tpu.vector_store %arg7[%c96, %c0_25], %31 {strides = array<i32>} : memref<144x256xbf16, #tpu.memory_space<vmem>>, vector<16x256xbf16>,
    %c0_26 = arith.constant 0 : index
    %c144 = arith.constant 144 : index
    %33 = vector.load %arg6[%c0_26, %c144] : memref<16x512xbf16, #tpu.memory_space<vmem>>, vector<16x256xbf16>
    %c112_27 = arith.constant 112 : index
    %c0_28 = arith.constant 0 : index
    %34 = vector.load %arg7[%c112_27, %c0_28] : memref<144x256xbf16, #tpu.memory_space<vmem>>, vector<16x256xbf16>
    tpu.vector_store %arg7[%c112_27, %c0_28], %33 {strides = array<i32>} : memref<144x256xbf16, #tpu.memory_space<vmem>>, vector<16x256xbf16>,
    %c0_29 = arith.constant 0 : index
    %c145 = arith.constant 145 : index
    %35 = vector.load %arg6[%c0_29, %c145] : memref<16x512xbf16, #tpu.memory_space<vmem>>, vector<16x256xbf16>
    %36 = arith.mulf %35, %5 : vector<16x256xbf16>
    %c128_30 = arith.constant 128 : index
    %c0_31 = arith.constant 0 : index
    %37 = vector.load %arg7[%c128_30, %c0_31] : memref<144x256xbf16, #tpu.memory_space<vmem>>, vector<16x256xbf16>
    tpu.vector_store %arg7[%c128_30, %c0_31], %36 {strides = array<i32>} : memref<144x256xbf16, #tpu.memory_space<vmem>>, vector<16x256xbf16>,
    %c0_32 = arith.constant 0 : index
    %c0_33 = arith.constant 0 : index
    %38 = vector.load %arg2[%c0_32, %c0_33] : memref<16x144xbf16, #tpu.memory_space<vmem>>, vector<16x144xbf16>
    %c0_34 = arith.constant 0 : index
    %c0_35 = arith.constant 0 : index
    %39 = vector.load %arg7[%c0_34, %c0_35] : memref<144x256xbf16, #tpu.memory_space<vmem>>, vector<144x256xbf16>
    %cst_36 = arith.constant dense<0.000000e+00> : vector<16x256xf32>
    %40 = tpu.matmul %38, %39, %cst_36 {dimension_numbers = #tpu.dot_dimension_numbers<[1], [0], [0], [1], [0, 0, 1, 1], [], []>} : vector<16x144xbf16>, vector<144x256xbf16>, vector<16x256xf32> -> vector<16x256xf32>
    %cst_37 = arith.constant 0.000000e+00 : f32
    %41 = vector.broadcast %cst_37 : f32 to vector<16x256xf32>
    %42 = arith.cmpf oge, %40, %41 : vector<16x256xf32>
    %cst_38 = arith.constant 1.000000e-01 : f32
    %43 = vector.broadcast %cst_38 : f32 to vector<16x256xf32>
    %44 = arith.mulf %43, %40 : vector<16x256xf32>
    %45 = arith.select %42, %40, %44 : vector<16x256xi1>, vector<16x256xf32>
    %46 = arith.truncf %45 : vector<16x256xf32> to vector<16x256xbf16>
    %c0_39 = arith.constant 0 : index
    %c128_40 = arith.constant 128 : index
    %47 = vector.load %arg6[%c0_39, %c128_40] : memref<16x512xbf16, #tpu.memory_space<vmem>>, vector<16x256xbf16>
    tpu.vector_store %arg6[%c0_39, %c128_40], %46 {strides = array<i32>} : memref<16x512xbf16, #tpu.memory_space<vmem>>, vector<16x256xbf16>,
    %c0_41 = arith.constant 0 : index
    %c111_42 = arith.constant 111 : index
    %48 = vector.load %arg6[%c0_41, %c111_42] : memref<16x512xbf16, #tpu.memory_space<vmem>>, vector<16x256xbf16>
    %49 = arith.mulf %48, %2 : vector<16x256xbf16>
    %c0_43 = arith.constant 0 : index
    %c0_44 = arith.constant 0 : index
    %50 = vector.load %arg7[%c0_43, %c0_44] : memref<144x256xbf16, #tpu.memory_space<vmem>>, vector<16x256xbf16>
    tpu.vector_store %arg7[%c0_43, %c0_44], %49 {strides = array<i32>} : memref<144x256xbf16, #tpu.memory_space<vmem>>, vector<16x256xbf16>,
    %c0_45 = arith.constant 0 : index
    %c112_46 = arith.constant 112 : index
    %51 = vector.load %arg6[%c0_45, %c112_46] : memref<16x512xbf16, #tpu.memory_space<vmem>>, vector<16x256xbf16>
    %c16_47 = arith.constant 16 : index
    %c0_48 = arith.constant 0 : index
    %52 = vector.load %arg7[%c16_47, %c0_48] : memref<144x256xbf16, #tpu.memory_space<vmem>>, vector<16x256xbf16>
    tpu.vector_store %arg7[%c16_47, %c0_48], %51 {strides = array<i32>} : memref<144x256xbf16, #tpu.memory_space<vmem>>, vector<16x256xbf16>,
    %c0_49 = arith.constant 0 : index
    %c113_50 = arith.constant 113 : index
    %53 = vector.load %arg6[%c0_49, %c113_50] : memref<16x512xbf16, #tpu.memory_space<vmem>>, vector<16x256xbf16>
    %54 = arith.mulf %53, %5 : vector<16x256xbf16>
    %c32_51 = arith.constant 32 : index
    %c0_52 = arith.constant 0 : index
    %55 = vector.load %arg7[%c32_51, %c0_52] : memref<144x256xbf16, #tpu.memory_space<vmem>>, vector<16x256xbf16>
    tpu.vector_store %arg7[%c32_51, %c0_52], %54 {strides = array<i32>} : memref<144x256xbf16, #tpu.memory_space<vmem>>, vector<16x256xbf16>,
    %c0_53 = arith.constant 0 : index
    %c127_54 = arith.constant 127 : index
    %56 = vector.load %arg6[%c0_53, %c127_54] : memref<16x512xbf16, #tpu.memory_space<vmem>>, vector<16x256xbf16>
    %57 = arith.mulf %56, %2 : vector<16x256xbf16>
    %c48_55 = arith.constant 48 : index
    %c0_56 = arith.constant 0 : index
    %58 = vector.load %arg7[%c48_55, %c0_56] : memref<144x256xbf16, #tpu.memory_space<vmem>>, vector<16x256xbf16>
    tpu.vector_store %arg7[%c48_55, %c0_56], %57 {strides = array<i32>} : memref<144x256xbf16, #tpu.memory_space<vmem>>, vector<16x256xbf16>,
    %c0_57 = arith.constant 0 : index
    %c128_58 = arith.constant 128 : index
    %59 = vector.load %arg6[%c0_57, %c128_58] : memref<16x512xbf16, #tpu.memory_space<vmem>>, vector<16x256xbf16>
    %c64_59 = arith.constant 64 : index
    %c0_60 = arith.constant 0 : index
    %60 = vector.load %arg7[%c64_59, %c0_60] : memref<144x256xbf16, #tpu.memory_space<vmem>>, vector<16x256xbf16>
    tpu.vector_store %arg7[%c64_59, %c0_60], %59 {strides = array<i32>} : memref<144x256xbf16, #tpu.memory_space<vmem>>, vector<16x256xbf16>,
    %c0_61 = arith.constant 0 : index
    %c129_62 = arith.constant 129 : index
    %61 = vector.load %arg6[%c0_61, %c129_62] : memref<16x512xbf16, #tpu.memory_space<vmem>>, vector<16x256xbf16>
    %62 = arith.mulf %61, %5 : vector<16x256xbf16>
    %c80_63 = arith.constant 80 : index
    %c0_64 = arith.constant 0 : index
    %63 = vector.load %arg7[%c80_63, %c0_64] : memref<144x256xbf16, #tpu.memory_space<vmem>>, vector<16x256xbf16>
    tpu.vector_store %arg7[%c80_63, %c0_64], %62 {strides = array<i32>} : memref<144x256xbf16, #tpu.memory_space<vmem>>, vector<16x256xbf16>,
    %c0_65 = arith.constant 0 : index
    %c143_66 = arith.constant 143 : index
    %64 = vector.load %arg6[%c0_65, %c143_66] : memref<16x512xbf16, #tpu.memory_space<vmem>>, vector<16x256xbf16>
    %65 = arith.mulf %64, %2 : vector<16x256xbf16>
    %c96_67 = arith.constant 96 : index
    %c0_68 = arith.constant 0 : index
    %66 = vector.load %arg7[%c96_67, %c0_68] : memref<144x256xbf16, #tpu.memory_space<vmem>>, vector<16x256xbf16>
    tpu.vector_store %arg7[%c96_67, %c0_68], %65 {strides = array<i32>} : memref<144x256xbf16, #tpu.memory_space<vmem>>, vector<16x256xbf16>,
    %c0_69 = arith.constant 0 : index
    %c144_70 = arith.constant 144 : index
    %67 = vector.load %arg6[%c0_69, %c144_70] : memref<16x512xbf16, #tpu.memory_space<vmem>>, vector<16x256xbf16>
    %c112_71 = arith.constant 112 : index
    %c0_72 = arith.constant 0 : index
    %68 = vector.load %arg7[%c112_71, %c0_72] : memref<144x256xbf16, #tpu.memory_space<vmem>>, vector<16x256xbf16>
    tpu.vector_store %arg7[%c112_71, %c0_72], %67 {strides = array<i32>} : memref<144x256xbf16, #tpu.memory_space<vmem>>, vector<16x256xbf16>,
    %c0_73 = arith.constant 0 : index
    %c145_74 = arith.constant 145 : index
    %69 = vector.load %arg6[%c0_73, %c145_74] : memref<16x512xbf16, #tpu.memory_space<vmem>>, vector<16x256xbf16>
    %70 = arith.mulf %69, %5 : vector<16x256xbf16>
    %c128_75 = arith.constant 128 : index
    %c0_76 = arith.constant 0 : index
    %71 = vector.load %arg7[%c128_75, %c0_76] : memref<144x256xbf16, #tpu.memory_space<vmem>>, vector<16x256xbf16>
    tpu.vector_store %arg7[%c128_75, %c0_76], %70 {strides = array<i32>} : memref<144x256xbf16, #tpu.memory_space<vmem>>, vector<16x256xbf16>,
    %c0_77 = arith.constant 0 : index
    %c0_78 = arith.constant 0 : index
    %72 = vector.load %arg3[%c0_77, %c0_78] : memref<16x144xbf16, #tpu.memory_space<vmem>>, vector<16x144xbf16>
    %c0_79 = arith.constant 0 : index
    %c0_80 = arith.constant 0 : index
    %73 = vector.load %arg7[%c0_79, %c0_80] : memref<144x256xbf16, #tpu.memory_space<vmem>>, vector<144x256xbf16>
    %cst_81 = arith.constant dense<0.000000e+00> : vector<16x256xf32>
    %74 = tpu.matmul %72, %73, %cst_81 {dimension_numbers = #tpu.dot_dimension_numbers<[1], [0], [0], [1], [0, 0, 1, 1], [], []>} : vector<16x144xbf16>, vector<144x256xbf16>, vector<16x256xf32> -> vector<16x256xf32>
    %cst_82 = arith.constant 0.000000e+00 : f32
    %75 = vector.broadcast %cst_82 : f32 to vector<16x256xf32>
    %76 = arith.cmpf oge, %74, %75 : vector<16x256xf32>
    %cst_83 = arith.constant 1.000000e-01 : f32
    %77 = vector.broadcast %cst_83 : f32 to vector<16x256xf32>
    %78 = arith.mulf %77, %74 : vector<16x256xf32>
    %79 = arith.select %76, %74, %78 : vector<16x256xi1>, vector<16x256xf32>
    %c0_84 = arith.constant 0 : index
    %c0_85 = arith.constant 0 : index
    %c0_86 = arith.constant 0 : index
    %80 = vector.load %arg1[%c0_84, %c0_85, %c0_86] : memref<1x16x256xf32, #tpu.memory_space<vmem>>, vector<1x16x256xf32>
    %81 = vector.shape_cast %80 : vector<1x16x256xf32> to vector<16x256xf32>
    %82 = arith.addf %81, %79 : vector<16x256xf32>
    %c0_87 = arith.constant 0 : index
    %c0_88 = arith.constant 0 : index
    %c0_89 = arith.constant 0 : index
    %83 = vector.load %arg5[%c0_87, %c0_88, %c0_89] : memref<1x16x256xf32, #tpu.memory_space<vmem>>, vector<1x16x256xf32>
    %84 = vector.shape_cast %83 : vector<1x16x256xf32> to vector<16x256xf32>
    %85 = vector.shape_cast %82 : vector<16x256xf32> to vector<1x16x256xf32>
    tpu.vector_store %arg5[%c0_87, %c0_88, %c0_89], %85 {strides = array<i32>} : memref<1x16x256xf32, #tpu.memory_space<vmem>>, vector<1x16x256xf32>,
    return
  }
  func.func @transform_0(%arg0: i32) -> (i32, i32, i32) {
    %c0_i32 = arith.constant 0 : i32
    %c0_i32_0 = arith.constant 0 : i32
    %c0_i32_1 = arith.constant 0 : i32
    return %arg0, %c0_i32, %c0_i32_0 : i32, i32, i32
  }
  func.func @transform_1(%arg0: i32) -> (i32, i32) {
    %c0_i32 = arith.constant 0 : i32
    %c0_i32_0 = arith.constant 0 : i32
    %c0_i32_1 = arith.constant 0 : i32
    return %c0_i32, %c0_i32_0 : i32, i32
  }
  func.func @transform_2(%arg0: i32) -> (i32, i32) {
    %c0_i32 = arith.constant 0 : i32
    %c0_i32_0 = arith.constant 0 : i32
    %c0_i32_1 = arith.constant 0 : i32
    return %c0_i32, %c0_i32_0 : i32, i32
  }
  func.func @transform_3(%arg0: i32) -> (i32, i32) {
    %c0_i32 = arith.constant 0 : i32
    %c0_i32_0 = arith.constant 0 : i32
    %c0_i32_1 = arith.constant 0 : i32
    return %c0_i32, %c0_i32_0 : i32, i32
  }
  func.func @transform_4(%arg0: i32) -> (i32, i32, i32) {
    %c0_i32 = arith.constant 0 : i32
    %c0_i32_0 = arith.constant 0 : i32
    %c0_i32_1 = arith.constant 0 : i32
    return %arg0, %c0_i32, %c0_i32_0 : i32, i32, i32
  }
}

</mosaic_0001>

<llo_original>
// kernel: residual_block_nonorm.1
$region0: #{residual_block_nonorm.1}
  #allocation0 [shape = 'u32[]', space=smem, size = 0x4, offset = 0x4, fixed_abs, tag = 'smem constant byte address 0x4 - core index']
  #allocation1 [shape = 'u32[144,128]{1,0:T(1,128)}', space=vmem, size = 0x12000, scoped, tag = 'internal scratch']
  #allocation2 [shape = 'bf16[16,512]{1,0:T(16,128)(2,1)}', space=vmem, size = 0x4000, scoped, tag = 'scratch operand']
  #allocation3 [shape = 'bf16[144,256]{1,0:T(16,128)(2,1)}', space=vmem, size = 0x12000, scoped, tag = 'scratch operand']
  %s0 = inlined_call_operand.vmem [shape: f32[2,16,256], index: 0, kind: input, shape index: {}]
  %s1 = inlined_call_operand.vmem [shape: bf16[16,144], index: 1, kind: input, shape index: {}]
  %s2 = inlined_call_operand.vmem [shape: bf16[16,144], index: 2, kind: input, shape index: {}]
  %s3 = inlined_call_operand.vmem [shape: bf16[2,256], index: 3, kind: input, shape index: {}]
  %s4 = inlined_call_operand.vmem [shape: f32[2,16,256], index: 4, kind: output, shape index: {}]
  %s5 = sld [smem:[#allocation0]]
  $region49: #{residual_block_nonorm.1} parent=0
    _
  %s7 = ssub.s32 1, %s5
  %s8 = scalar_select 0, %s7, %s5
  loop: start=0, step=1, limit=4
  $region2: #{residual_block_nonorm.1} parent=0 // loop_pre_header
    _
  $region3: #{residual_block_nonorm.1} parent=0 // loop_header
    %s10 = sphi 0, %s14
    %p11 = scmp.ge.s32.totalorder %s10, 4
    %s20 = sphi 0, %s22
    %s23 = sphi 0, %s20
    %s24 = sphi 0, %s23
    %s40 = sphi 0, %s24
    %s44 = sphi 0, %s44
    %s46 = sphi 0, %s44
    %s47 = sphi 0, %s46
    %s61 = sphi 0, %s47
    %s65 = sphi 0, %s65
    %s67 = sphi 0, %s65
    %s68 = sphi 0, %s67
    %s82 = sphi 0, %s68
    %s86 = sphi 0, %s86
    %s88 = sphi 0, %s86
    %s89 = sphi 0, %s88
    %s103 = sphi 0, %s89
    %s109 = sphi 0, %s111
    %s112 = sphi 0, %s109
    %s113 = sphi 0, %s112
    %s129 = sphi 0, %s113
  $region4: #{residual_block_nonorm.1} parent=0 // loop_header_branch
    %13 = sbr.rel (%p11) target = $region8
  $region5: #{residual_block_nonorm.1} parent=0 // loop_body
    %s15 = ssub.s32 %s10, 1
    %s16 = ssub.s32 %s10, 2
    %s17 = sadd.s32 %s10, 1
    %s18 = ssub.s32 %s10, %s17
    %p19 = scmp.eq.s32.totalorder %s18, 0
    %s21 = sadd.s32 %s20, 1
    %s22 = scalar_select %p19, %s20, %s21
    %p25 = pneg %p19
    %p26 = scmp.eq.s32.totalorder %s10, 1
    %p27 = por %p25, %p26
    %p28 = scmp.ne.s32.totalorder %s20, %s23
    %p29 = scmp.eq.s32.totalorder %s10, 0
    %p30 = por %p28, %p29
    %p31 = scmp.ne.s32.totalorder %s20, %s23
    %p32 = scmp.eq.s32.totalorder %s15, 1
    %p33 = por %p31, %p32
    %p34 = scmp.ne.s32.totalorder %s23, %s24
    %p35 = scmp.eq.s32.totalorder %s15, 0
    %p36 = por %p34, %p35
    %p37 = scmp.ne.s32.totalorder %s23, %s24
    %p38 = scmp.eq.s32.totalorder %s16, 1
    %p39 = por %p37, %p38
    %p41 = scmp.ne.s32.totalorder %s24, %s40
    %p42 = scmp.eq.s32.totalorder %s16, 0
    %p43 = por %p41, %p42
    %s45 = sadd.s32 %s44, 1
    %p48 = scmp.eq.s32.totalorder %s10, 1
    %p49 = scmp.ne.s32.totalorder %s44, %s46
    %p50 = scmp.eq.s32.totalorder %s10, 0
    %p51 = por %p49, %p50
    %p52 = scmp.ne.s32.totalorder %s44, %s46
    %p53 = scmp.eq.s32.totalorder %s15, 1
    %p54 = por %p52, %p53
    %p55 = scmp.ne.s32.totalorder %s46, %s47
    %p56 = scmp.eq.s32.totalorder %s15, 0
    %p57 = por %p55, %p56
    %p58 = scmp.ne.s32.totalorder %s46, %s47
    %p59 = scmp.eq.s32.totalorder %s16, 1
    %p60 = por %p58, %p59
    %p62 = scmp.ne.s32.totalorder %s47, %s61
    %p63 = scmp.eq.s32.totalorder %s16, 0
    %p64 = por %p62, %p63
    %s66 = sadd.s32 %s65, 1
    %p69 = scmp.eq.s32.totalorder %s10, 1
    %p70 = scmp.ne.s32.totalorder %s65, %s67
    %p71 = scmp.eq.s32.totalorder %s10, 0
    %p72 = por %p70, %p71
    %p73 = scmp.ne.s32.totalorder %s65, %s67
    %p74 = scmp.eq.s32.totalorder %s15, 1
    %p75 = por %p73, %p74
    %p76 = scmp.ne.s32.totalorder %s67, %s68
    %p77 = scmp.eq.s32.totalorder %s15, 0
    %p78 = por %p76, %p77
    %p79 = scmp.ne.s32.totalorder %s67, %s68
    %p80 = scmp.eq.s32.totalorder %s16, 1
    %p81 = por %p79, %p80
    %p83 = scmp.ne.s32.totalorder %s68, %s82
    %p84 = scmp.eq.s32.totalorder %s16, 0
    %p85 = por %p83, %p84
    %s87 = sadd.s32 %s86, 1
    %p90 = scmp.eq.s32.totalorder %s10, 1
    %p91 = scmp.ne.s32.totalorder %s86, %s88
    %p92 = scmp.eq.s32.totalorder %s10, 0
    %p93 = por %p91, %p92
    %p94 = scmp.ne.s32.totalorder %s86, %s88
    %p95 = scmp.eq.s32.totalorder %s15, 1
    %p96 = por %p94, %p95
    %p97 = scmp.ne.s32.totalorder %s88, %s89
    %p98 = scmp.eq.s32.totalorder %s15, 0
    %p99 = por %p97, %p98
    %p100 = scmp.ne.s32.totalorder %s88, %s89
    %p101 = scmp.eq.s32.totalorder %s16, 1
    %p102 = por %p100, %p101
    %p104 = scmp.ne.s32.totalorder %s89, %s103
    %p105 = scmp.eq.s32.totalorder %s16, 0
    %p106 = por %p104, %p105
    %s107 = ssub.s32 %s10, %s17
    %p108 = scmp.eq.s32.totalorder %s107, 0
    %s110 = sadd.s32 %s109, 1
    %s111 = scalar_select %p108, %s109, %s110
    %p114 = pneg %p108
    %p115 = scmp.eq.s32.totalorder %s10, 1
    %p116 = por %p114, %p115
    %p117 = scmp.ne.s32.totalorder %s109, %s112
    %p118 = scmp.eq.s32.totalorder %s10, 0
    %p119 = por %p117, %p118
    %p120 = scmp.ne.s32.totalorder %s109, %s112
    %p121 = scmp.eq.s32.totalorder %s15, 1
    %p122 = por %p120, %p121
    %p123 = scmp.ne.s32.totalorder %s112, %s113
    %p124 = scmp.eq.s32.totalorder %s15, 0
    %p125 = por %p123, %p124
    %p126 = scmp.ne.s32.totalorder %s112, %s113
    %p127 = scmp.eq.s32.totalorder %s16, 1
    %p128 = por %p126, %p127
    %p130 = scmp.ne.s32.totalorder %s113, %s129
    %p131 = scmp.eq.s32.totalorder %s16, 0
    %p132 = por %p130, %p131
    %p133 = scmp.le.s32.totalorder 1, %s10
    %p134 = scmp.lt.s32.totalorder %s10, 3
    %p135 = pnand %p133, %p134
    %p136 = pneg %p135
    // Predicated region
    $region9: #{residual_block_nonorm.1} parent=5 // pred_check
      _
    $region10: #{residual_block_nonorm.1} parent=5 // pred_check_branch
      %138 = sbr.rel (%p135) target = $region12
    $region11: #{residual_block_nonorm.1} parent=5 // pred_region
      %s139 = ssub.s32 %s10, 1
      // Predicated region
      $region13: #{residual_block_nonorm.1} parent=11 // pred_check
        %p140 = pneg %p57
      $region14: #{residual_block_nonorm.1} parent=11 // pred_check_branch
        %142 = sbr.rel (%p140) target = $region16
      $region15: #{residual_block_nonorm.1} parent=11 // pred_region
        _
      $region16: #{residual_block_nonorm.1} parent=11 // pred_fallthru
        _
      // Predicated region
      $region17: #{residual_block_nonorm.1} parent=11 // pred_check
        %p143 = pneg %p78
      $region18: #{residual_block_nonorm.1} parent=11 // pred_check_branch
        %145 = sbr.rel (%p143) target = $region20
      $region19: #{residual_block_nonorm.1} parent=11 // pred_region
        _
      $region20: #{residual_block_nonorm.1} parent=11 // pred_fallthru
        _
      // Predicated region
      $region21: #{residual_block_nonorm.1} parent=11 // pred_check
        %p146 = pneg %p99
      $region22: #{residual_block_nonorm.1} parent=11 // pred_check_branch
        %148 = sbr.rel (%p146) target = $region24
      $region23: #{residual_block_nonorm.1} parent=11 // pred_region
        _
      $region24: #{residual_block_nonorm.1} parent=11 // pred_fallthru
        _
    $region12: #{residual_block_nonorm.1} parent=5 // pred_fallthru
      _
    %p149 = scmp.lt.s32.totalorder %s10, 2
    // Predicated region
    $region25: #{residual_block_nonorm.1} parent=5 // pred_check
      %p150 = pneg %p149
    $region26: #{residual_block_nonorm.1} parent=5 // pred_check_branch
      %152 = sbr.rel (%p150) target = $region28
    $region27: #{residual_block_nonorm.1} parent=5 // pred_region
      // Predicated region
      $region29: #{residual_block_nonorm.1} parent=27 // pred_check
        %p153 = pneg %p30
      $region30: #{residual_block_nonorm.1} parent=27 // pred_check_branch
        %155 = sbr.rel (%p153) target = $region32
      $region31: #{residual_block_nonorm.1} parent=27 // pred_region
        %p156 = scmp.lt.s32.totalorder %s10, 1
        %s157 = scalar_select %p156, %s10, 1
        %s158 = smul.addr %s157, 4
        %s159 = smul.addr %s158, 8
        %s160 = scalar_lea.vmem %s0, %s159
      $region32: #{residual_block_nonorm.1} parent=27 // pred_fallthru
        _
    $region28: #{residual_block_nonorm.1} parent=5 // pred_fallthru
      _
    %p161 = scmp.le.s32.totalorder 1, %s10
    %p162 = scmp.lt.s32.totalorder %s10, 3
    %p163 = pnand %p161, %p162
    %p164 = pneg %p163
    // Predicated region
    $region33: #{residual_block_nonorm.1} parent=5 // pred_check
      _
    $region34: #{residual_block_nonorm.1} parent=5 // pred_check_branch
      %166 = sbr.rel (%p163) target = $region36
    $region35: #{residual_block_nonorm.1} parent=5 // pred_region
      %s167 = ssub.s32 %s10, 1
      %p168 = scmp.lt.s32.totalorder %s15, 1
      %s169 = scalar_select %p168, %s15, 1
      %s170 = smul.addr %s169, 4
      %s171 = smul.addr %s170, 8
      %s172 = scalar_lea.vmem %s0, %s171
      %p173 = pneg %p36
      %p174 = pneg %p33
      %p175 = pneg %p57
      %p176 = pneg %p54
      %p177 = pneg %p78
      %p178 = pneg %p75
      %p179 = pneg %p99
      %p180 = pneg %p96
      %p181 = pneg %p125
      %p182 = pneg %p122
      %p183 = scmp.lt.s32.totalorder %s15, 1
      %s184 = scalar_select %p183, %s15, 1
      %s185 = smul.addr %s184, 4
      %s186 = smul.addr %s185, 8
      %s187 = scalar_lea.vmem %s4, %s186
      %p188 = scmp.lt.s32.totalorder %s15, 1
      %s189 = scalar_select %p188, %s15, 1
      %s190 = smul.addr %s189, 4
      %s191 = smul.addr %s190, 8
      %s192 = scalar_lea.vmem %s0, %s191
      %p193 = scmp.lt.s32.totalorder %s15, 1
      %s194 = scalar_select %p193, %s15, 1
      %s195 = smul.addr %s194, 4
      %s196 = smul.addr %s195, 8
      %s197 = scalar_lea.vmem %s4, %s196
      %v199 = vld [vmem:[%s3] sm:$0x3]
      %v202 = vunpack.c.l.s4 1966171168
      %v203 = vunpack.c.0.s8 %v202
      %v204 = vlaneseq
      %v205 = vshrl.u32 %v204, 7
      %v206 = vsub.s32 %v203, %v205
      %v207 = vrot.slane %v199, %v206
      %v208 = vcombine.high %v207, %v207
      %v210 = vunpack.c.l.s4 1966171168
      %v211 = vunpack.c.0.s8 %v210
      %v212 = vlaneseq
      %v213 = vshrl.u32 %v212, 7
      %v214 = vsub.s32 %v211, %v213
      %v215 = vrot.slane %v207, %v214
      %v217 = vunpack.c.l.s4 1966171168
      %v218 = vunpack.c.0.s8 %v217
      %v219 = vlaneseq
      %v220 = vshrl.u32 %v219, 7
      %v221 = vsub.s32 %v218, %v220
      %v222 = vrot.slane %v208, %v221
      %v224 = vpack.i.b16 %v215, %v215
      %v226 = vlaneseq
      %v227 = vshrl.u32 %v226, 7
      %v228 = vsub.s32 0, %v227
      %v229 = vrot.slane %v224, %v228
      %v231 = vpack.i.b16 %v222, %v222
      %v233 = vlaneseq
      %v234 = vshrl.u32 %v233, 7
      %v235 = vsub.s32 0, %v234
      %v236 = vrot.slane %v231, %v235
      %v237 = vshrl.u32 %v215, 16
      %v238 = vpack.i.b16 %v237, %v237
      %v240 = vlaneseq
      %v241 = vshrl.u32 %v240, 7
      %v242 = vsub.s32 0, %v241
      %v243 = vrot.slane %v238, %v242
      %v244 = vshrl.u32 %v222, 16
      %v245 = vpack.i.b16 %v244, %v244
      %v247 = vlaneseq
      %v248 = vshrl.u32 %v247, 7
      %v249 = vsub.s32 0, %v248
      %v250 = vrot.slane %v245, %v249
      %251 = vst [vmem:[#allocation2] sm:$0xff] 0
      %252 = vst [vmem:[#allocation2 + $0x18] sm:$0xff] 0
      %v253 = vld [vmem:[%s192] sm:$0xff]
      %v254 = vld [vmem:[%s192 + $0x8] sm:$0xff]
      %v255 = vld [vmem:[%s192 + $0x10] sm:$0xff]
      %v256 = vld [vmem:[%s192 + $0x18] sm:$0xff]
      %v257 = vpack.c.bf16 %v255, %v253
      %v258 = vpack.c.bf16 %v256, %v254
      %259 = vst [vmem:[#allocation2 + $0x8] sm:$0xff] %v257
      %260 = vst [vmem:[#allocation2 + $0x10] sm:$0xff] %v258
      %v261 = vld [vmem:[#allocation2] sm:$0xff]
      %v262 = vld [vmem:[#allocation2 + $0x8] sm:$0xff]
      %v263 = vld [vmem:[#allocation2 + $0x10] sm:$0xff]
      %266 = vrot.lane.b32.xlu0 %v229, 111
      %v267 = vpop.permute.xlu0 %266
      %268 = vrot.lane.b32.xlu0 %v236, 111
      %v269 = vpop.permute.xlu0 %268
      %vm270 = vcmask 908288
      %v271 = vsel %vm270, %v267, %v269
      %v275 = vmul.bf16 %v261, %v267
      %v276 = vmul.bf16 %v262, %v271
      %v277 = vmul.bf16 %v263, %v269
      %281 = vrot.lane.b32.xlu0 %v275, 17
      %v282 = vpop.permute.xlu0 %281
      %283 = vrot.lane.b32.xlu0 %v276, 17
      %v284 = vpop.permute.xlu0 %283
      %285 = vrot.lane.b32.xlu0 %v277, 17
      %v286 = vpop.permute.xlu0 %285
      %vm287 = vcmask 138240
      %v288 = vsel %vm287, %v282, %v284
      %v289 = vsel %vm287, %v284, %v286
      %292 = vst [vmem:[#allocation3] sm:$0xff] %v288
      %293 = vst [vmem:[#allocation3 + $0x8] sm:$0xff] %v289
      %v294 = vld [vmem:[#allocation2] sm:$0xff]
      %v295 = vld [vmem:[#allocation2 + $0x8] sm:$0xff]
      %v296 = vld [vmem:[#allocation2 + $0x10] sm:$0xff]
      %300 = vrot.lane.b32.xlu0 %v294, 16
      %v301 = vpop.permute.xlu0 %300
      %302 = vrot.lane.b32.xlu0 %v295, 16
      %v303 = vpop.permute.xlu0 %302
      %304 = vrot.lane.b32.xlu0 %v296, 16
      %v305 = vpop.permute.xlu0 %304
      %vm306 = vcmask 130048
      %v307 = vsel %vm306, %v301, %v303
      %v308 = vsel %vm306, %v303, %v305
      %311 = vst [vmem:[#allocation3 + $0x10] sm:$0xff] %v307
      %312 = vst [vmem:[#allocation3 + $0x18] sm:$0xff] %v308
      %v313 = vld [vmem:[#allocation2] sm:$0xff]
      %v314 = vld [vmem:[#allocation2 + $0x8] sm:$0xff]
      %v315 = vld [vmem:[#allocation2 + $0x10] sm:$0xff]
      %318 = vrot.lane.b32.xlu0 %v243, 113
      %v319 = vpop.permute.xlu0 %318
      %320 = vrot.lane.b32.xlu0 %v250, 113
      %v321 = vpop.permute.xlu0 %320
      %vm322 = vcmask 924672
      %v323 = vsel %vm322, %v319, %v321
      %v327 = vmul.bf16 %v313, %v319
      %v328 = vmul.bf16 %v314, %v323
      %v329 = vmul.bf16 %v315, %v321
      %333 = vrot.lane.b32.xlu0 %v327, 15
      %v334 = vpop.permute.xlu0 %333
      %335 = vrot.lane.b32.xlu0 %v328, 15
      %v336 = vpop.permute.xlu0 %335
      %337 = vrot.lane.b32.xlu0 %v329, 15
      %v338 = vpop.permute.xlu0 %337
      %vm339 = vcmask 121856
      %v340 = vsel %vm339, %v334, %v336
      %v341 = vsel %vm339, %v336, %v338
      %344 = vst [vmem:[#allocation3 + $0x20] sm:$0xff] %v340
      %345 = vst [vmem:[#allocation3 + $0x28] sm:$0xff] %v341
      %v346 = vld [vmem:[#allocation2] sm:$0xff]
      %v347 = vld [vmem:[#allocation2 + $0x8] sm:$0xff]
      %v348 = vld [vmem:[#allocation2 + $0x10] sm:$0xff]
      %349 = vrot.lane.b32.xlu0 %v229, 127
      %v350 = vpop.permute.xlu0 %349
      %351 = vrot.lane.b32.xlu0 %v236, 127
      %v352 = vpop.permute.xlu0 %351
      %vm353 = vcmask 1039360
      %v354 = vsel %vm353, %v350, %v352
      %v358 = vmul.bf16 %v346, %v350
      %v359 = vmul.bf16 %v347, %v354
      %v360 = vmul.bf16 %v348, %v352
      %364 = vrot.lane.b32.xlu0 %v358, 1
      %v365 = vpop.permute.xlu0 %364
      %366 = vrot.lane.b32.xlu0 %v359, 1
      %v367 = vpop.permute.xlu0 %366
      %368 = vrot.lane.b32.xlu0 %v360, 1
      %v369 = vpop.permute.xlu0 %368
      %vm370 = vcmask 7168
      %v371 = vsel %vm370, %v365, %v367
      %v372 = vsel %vm370, %v367, %v369
      %375 = vst [vmem:[#allocation3 + $0x30] sm:$0xff] %v371
      %376 = vst [vmem:[#allocation3 + $0x38] sm:$0xff] %v372
      %v377 = vld [vmem:[#allocation2 + $0x8] sm:$0xff]
      %v378 = vld [vmem:[#allocation2 + $0x10] sm:$0xff]
      %379 = vst [vmem:[#allocation3 + $0x40] sm:$0xff] %v377
      %380 = vst [vmem:[#allocation3 + $0x48] sm:$0xff] %v378
      %v381 = vld [vmem:[#allocation2 + $0x8] sm:$0xff]
      %v382 = vld [vmem:[#allocation2 + $0x10] sm:$0xff]
      %v383 = vld [vmem:[#allocation2 + $0x18] sm:$0xff]
      %384 = vrot.lane.b32.xlu0 %v243, 1
      %v385 = vpop.permute.xlu0 %384
      %386 = vrot.lane.b32.xlu0 %v250, 1
      %v387 = vpop.permute.xlu0 %386
      %v388 = vsel %vm370, %v385, %v387
      %v392 = vmul.bf16 %v381, %v385
      %v393 = vmul.bf16 %v382, %v388
      %v394 = vmul.bf16 %v383, %v387
      %398 = vrot.lane.b32.xlu0 %v392, 127
      %v399 = vpop.permute.xlu0 %398
      %400 = vrot.lane.b32.xlu0 %v393, 127
      %v401 = vpop.permute.xlu0 %400
      %402 = vrot.lane.b32.xlu0 %v394, 127
      %v403 = vpop.permute.xlu0 %402
      %v404 = vsel %vm353, %v399, %v401
      %v405 = vsel %vm353, %v401, %v403
      %408 = vst [vmem:[#allocation3 + $0x50] sm:$0xff] %v404
      %409 = vst [vmem:[#allocation3 + $0x58] sm:$0xff] %v405
      %v410 = vld [vmem:[#allocation2 + $0x8] sm:$0xff]
      %v411 = vld [vmem:[#allocation2 + $0x10] sm:$0xff]
      %v412 = vld [vmem:[#allocation2 + $0x18] sm:$0xff]
      %413 = vrot.lane.b32.xlu0 %v229, 15
      %v414 = vpop.permute.xlu0 %413
      %415 = vrot.lane.b32.xlu0 %v236, 15
      %v416 = vpop.permute.xlu0 %415
      %v417 = vsel %vm339, %v414, %v416
      %v421 = vmul.bf16 %v410, %v414
      %v422 = vmul.bf16 %v411, %v417
      %v423 = vmul.bf16 %v412, %v416
      %427 = vrot.lane.b32.xlu0 %v421, 113
      %v428 = vpop.permute.xlu0 %427
      %429 = vrot.lane.b32.xlu0 %v422, 113
      %v430 = vpop.permute.xlu0 %429
      %431 = vrot.lane.b32.xlu0 %v423, 113
      %v432 = vpop.permute.xlu0 %431
      %v433 = vsel %vm322, %v428, %v430
      %v434 = vsel %vm322, %v430, %v432
      %437 = vst [vmem:[#allocation3 + $0x60] sm:$0xff] %v433
      %438 = vst [vmem:[#allocation3 + $0x68] sm:$0xff] %v434
      %v439 = vld [vmem:[#allocation2 + $0x8] sm:$0xff]
      %v440 = vld [vmem:[#allocation2 + $0x10] sm:$0xff]
      %v441 = vld [vmem:[#allocation2 + $0x18] sm:$0xff]
      %445 = vrot.lane.b32.xlu0 %v439, 112
      %v446 = vpop.permute.xlu0 %445
      %447 = vrot.lane.b32.xlu0 %v440, 112
      %v448 = vpop.permute.xlu0 %447
      %449 = vrot.lane.b32.xlu0 %v441, 112
      %v450 = vpop.permute.xlu0 %449
      %vm451 = vcmask 916480
      %v452 = vsel %vm451, %v446, %v448
      %v453 = vsel %vm451, %v448, %v450
      %456 = vst [vmem:[#allocation3 + $0x70] sm:$0xff] %v452
      %457 = vst [vmem:[#allocation3 + $0x78] sm:$0xff] %v453
      %v458 = vld [vmem:[#allocation2 + $0x8] sm:$0xff]
      %v459 = vld [vmem:[#allocation2 + $0x10] sm:$0xff]
      %v460 = vld [vmem:[#allocation2 + $0x18] sm:$0xff]
      %461 = vrot.lane.b32.xlu0 %v243, 17
      %v462 = vpop.permute.xlu0 %461
      %463 = vrot.lane.b32.xlu0 %v250, 17
      %v464 = vpop.permute.xlu0 %463
      %v465 = vsel %vm287, %v462, %v464
      %v469 = vmul.bf16 %v458, %v462
      %v470 = vmul.bf16 %v459, %v465
      %v471 = vmul.bf16 %v460, %v464
      %475 = vrot.lane.b32.xlu0 %v469, 111
      %v476 = vpop.permute.xlu0 %475
      %477 = vrot.lane.b32.xlu0 %v470, 111
      %v478 = vpop.permute.xlu0 %477
      %479 = vrot.lane.b32.xlu0 %v471, 111
      %v480 = vpop.permute.xlu0 %479
      %v481 = vsel %vm270, %v476, %v478
      %v482 = vsel %vm270, %v478, %v480
      %485 = vst [vmem:[#allocation3 + $0x80] sm:$0xff] %v481
      %486 = vst [vmem:[#allocation3 + $0x88] sm:$0xff] %v482
      %v487 = vld [vmem:[%s1] sm:$0xff]
      %v488 = vld [vmem:[%s1 + $0x8] sm:$0xff]
      %v489 = vld [vmem:[#allocation3] sm:$0xff]
      %v490 = vld [vmem:[#allocation3 + $0x8] sm:$0xff]
      %v491 = vld [vmem:[#allocation3 + $0x10] sm:$0xff]
      %v492 = vld [vmem:[#allocation3 + $0x18] sm:$0xff]
      %v493 = vld [vmem:[#allocation3 + $0x20] sm:$0xff]
      %v494 = vld [vmem:[#allocation3 + $0x28] sm:$0xff]
      %v495 = vld [vmem:[#allocation3 + $0x30] sm:$0xff]
      %v496 = vld [vmem:[#allocation3 + $0x38] sm:$0xff]
      %v497 = vld [vmem:[#allocation3 + $0x40] sm:$0xff]
      %v498 = vld [vmem:[#allocation3 + $0x48] sm:$0xff]
      %v499 = vld [vmem:[#allocation3 + $0x50] sm:$0xff]
      %v500 = vld [vmem:[#allocation3 + $0x58] sm:$0xff]
      %v501 = vld [vmem:[#allocation3 + $0x60] sm:$0xff]
      %v502 = vld [vmem:[#allocation3 + $0x68] sm:$0xff]
      %v503 = vld [vmem:[#allocation3 + $0x70] sm:$0xff]
      %v504 = vld [vmem:[#allocation3 + $0x78] sm:$0xff]
      %v505 = vld [vmem:[#allocation3 + $0x80] sm:$0xff]
      %v506 = vld [vmem:[#allocation3 + $0x88] sm:$0xff]
      %v509 = vunpack.c.l.b16 %v487
      %v510 = vunpack.c.h.b16 %v487
      %v511 = vunpack.c.l.b16 %v488
      %v512 = vunpack.c.h.b16 %v488
      %v513 = vpack.c.b16 %v511, %v509
      %v514 = vpack.c.b16 %v512, %v510
      %vm516 = vcmask 130048
      %v518 = vsel %vm516, %v514, 0
      %520 = vmatprep.subr.bf16.mxu0 %v490
      %521 = vmatpush1.bf16.msra.mxu0 %v489
      %522 = vmatprep.subr.bf16.mxu0 %v492
      %523 = vmatpush1.bf16.msra.mxu0 %v491
      %524 = vmatprep.subr.bf16.mxu0 %v494
      %525 = vmatpush1.bf16.msra.mxu0 %v493
      %526 = vmatprep.subr.bf16.mxu0 %v496
      %527 = vmatpush1.bf16.msra.mxu0 %v495
      %528 = vmatprep.subr.bf16.mxu0 %v498
      %529 = vmatpush1.bf16.msra.mxu0 %v497
      %530 = vmatprep.subr.bf16.mxu0 %v500
      %531 = vmatpush1.bf16.msra.mxu0 %v499
      %532 = vmatprep.subr.bf16.mxu0 %v502
      %533 = vmatpush1.bf16.msra.mxu0 %v501
      %534 = vmatprep.subr.bf16.mxu0 %v504
      %535 = vmatpush1.bf16.msra.mxu0 %v503
      %536 = vmatprep.subr.bf16.mxu0 %v506
      %537 = vmatpush1.bf16.msra.mxu0 %v505
      %538 = vmatprep.subr.bf16.mxu0 0
      %539 = vmatpush1.bf16.msra.mxu0 0
      %540 = vmatprep.subr.bf16.mxu0 0
      %541 = vmatpush1.bf16.msra.mxu0 0
      %542 = vmatprep.subr.bf16.mxu0 0
      %543 = vmatpush1.bf16.msra.mxu0 0
      %544 = vmatprep.subr.bf16.mxu0 0
      %545 = vmatpush1.bf16.msra.mxu0 0
      %546 = vmatprep.subr.bf16.mxu0 0
      %547 = vmatpush1.bf16.msra.mxu0 0
      %548 = vmatprep.subr.bf16.mxu0 0
      %549 = vmatpush1.bf16.msra.mxu0 0
      %550 = vmatprep.subr.bf16.mxu0 0
      %551 = vmatpush1.bf16.msra.mxu0 0
      %552 = vmatprep.mubr.bf16.mxu0 %v518
      %553 = vmatmul.mubr.bf16.gmra.mrb[0].mxu0 %v513
      %v554 = vpop.f32.mrb[0].mxu0
      %v555 = vadd.f32 0.0, %v554
      %v556 = vpop.f32.mrb[0].mxu0
      %v557 = vadd.f32 0.0, %v556
      %v558 = vpop.f32.mrb[0].mxu0
      %v559 = vadd.f32 0.0, %v558
      %v560 = vpop.f32.mrb[0].mxu0
      %v561 = vadd.f32 0.0, %v560
      %562 = vdwg.mxu0
      %vm563 = vcmp.ge.f32.partialorder %v555, 0.0
      %vm564 = vcmp.ge.f32.partialorder %v557, 0.0
      %vm565 = vcmp.ge.f32.partialorder %v559, 0.0
      %vm566 = vcmp.ge.f32.partialorder %v561, 0.0
      %v567 = vmul.f32 %v555, 0.1
      %v568 = vmul.f32 %v557, 0.1
      %v569 = vmul.f32 %v559, 0.1
      %v570 = vmul.f32 %v561, 0.1
      %v571 = vsel %vm563, %v555, %v567
      %v572 = vsel %vm564, %v557, %v568
      %v573 = vsel %vm565, %v559, %v569
      %v574 = vsel %vm566, %v561, %v570
      %v575 = vpack.c.bf16 %v573, %v571
      %v576 = vpack.c.bf16 %v574, %v572
      %577 = vst [vmem:[#allocation2 + $0x8] sm:$0xff] %v575
      %578 = vst [vmem:[#allocation2 + $0x10] sm:$0xff] %v576
      %v579 = vld [vmem:[#allocation2] sm:$0xff]
      %v580 = vld [vmem:[#allocation2 + $0x8] sm:$0xff]
      %v581 = vld [vmem:[#allocation2 + $0x10] sm:$0xff]
      %v582 = vmul.bf16 %v579, %v267
      %v583 = vmul.bf16 %v580, %v271
      %v584 = vmul.bf16 %v581, %v269
      %588 = vrot.lane.b32.xlu0 %v582, 17
      %v589 = vpop.permute.xlu0 %588
      %590 = vrot.lane.b32.xlu0 %v583, 17
      %v591 = vpop.permute.xlu0 %590
      %592 = vrot.lane.b32.xlu0 %v584, 17
      %v593 = vpop.permute.xlu0 %592
      %v594 = vsel %vm287, %v589, %v591
      %v595 = vsel %vm287, %v591, %v593
      %598 = vst [vmem:[#allocation3] sm:$0xff] %v594
      %599 = vst [vmem:[#allocation3 + $0x8] sm:$0xff] %v595
      %v600 = vld [vmem:[#allocation2] sm:$0xff]
      %v601 = vld [vmem:[#allocation2 + $0x8] sm:$0xff]
      %v602 = vld [vmem:[#allocation2 + $0x10] sm:$0xff]
      %606 = vrot.lane.b32.xlu0 %v600, 16
      %v607 = vpop.permute.xlu0 %606
      %608 = vrot.lane.b32.xlu0 %v601, 16
      %v609 = vpop.permute.xlu0 %608
      %610 = vrot.lane.b32.xlu0 %v602, 16
      %v611 = vpop.permute.xlu0 %610
      %v612 = vsel %vm306, %v607, %v609
      %v613 = vsel %vm306, %v609, %v611
      %616 = vst [vmem:[#allocation3 + $0x10] sm:$0xff] %v612
      %617 = vst [vmem:[#allocation3 + $0x18] sm:$0xff] %v613
      %v618 = vld [vmem:[#allocation2] sm:$0xff]
      %v619 = vld [vmem:[#allocation2 + $0x8] sm:$0xff]
      %v620 = vld [vmem:[#allocation2 + $0x10] sm:$0xff]
      %v621 = vmul.bf16 %v618, %v319
      %v622 = vmul.bf16 %v619, %v323
      %v623 = vmul.bf16 %v620, %v321
      %627 = vrot.lane.b32.xlu0 %v621, 15
      %v628 = vpop.permute.xlu0 %627
      %629 = vrot.lane.b32.xlu0 %v622, 15
      %v630 = vpop.permute.xlu0 %629
      %631 = vrot.lane.b32.xlu0 %v623, 15
      %v632 = vpop.permute.xlu0 %631
      %v633 = vsel %vm339, %v628, %v630
      %v634 = vsel %vm339, %v630, %v632
      %637 = vst [vmem:[#allocation3 + $0x20] sm:$0xff] %v633
      %638 = vst [vmem:[#allocation3 + $0x28] sm:$0xff] %v634
      %v639 = vld [vmem:[#allocation2] sm:$0xff]
      %v640 = vld [vmem:[#allocation2 + $0x8] sm:$0xff]
      %v641 = vld [vmem:[#allocation2 + $0x10] sm:$0xff]
      %v642 = vmul.bf16 %v639, %v350
      %v643 = vmul.bf16 %v640, %v354
      %v644 = vmul.bf16 %v641, %v352
      %648 = vrot.lane.b32.xlu0 %v642, 1
      %v649 = vpop.permute.xlu0 %648
      %650 = vrot.lane.b32.xlu0 %v643, 1
      %v651 = vpop.permute.xlu0 %650
      %652 = vrot.lane.b32.xlu0 %v644, 1
      %v653 = vpop.permute.xlu0 %652
      %v654 = vsel %vm370, %v649, %v651
      %v655 = vsel %vm370, %v651, %v653
      %658 = vst [vmem:[#allocation3 + $0x30] sm:$0xff] %v654
      %659 = vst [vmem:[#allocation3 + $0x38] sm:$0xff] %v655
      %v660 = vld [vmem:[#allocation2 + $0x8] sm:$0xff]
      %v661 = vld [vmem:[#allocation2 + $0x10] sm:$0xff]
      %662 = vst [vmem:[#allocation3 + $0x40] sm:$0xff] %v660
      %663 = vst [vmem:[#allocation3 + $0x48] sm:$0xff] %v661
      %v664 = vld [vmem:[#allocation2 + $0x8] sm:$0xff]
      %v665 = vld [vmem:[#allocation2 + $0x10] sm:$0xff]
      %v666 = vld [vmem:[#allocation2 + $0x18] sm:$0xff]
      %v667 = vmul.bf16 %v664, %v385
      %v668 = vmul.bf16 %v665, %v388
      %v669 = vmul.bf16 %v666, %v387
      %673 = vrot.lane.b32.xlu0 %v667, 127
      %v674 = vpop.permute.xlu0 %673
      %675 = vrot.lane.b32.xlu0 %v668, 127
      %v676 = vpop.permute.xlu0 %675
      %677 = vrot.lane.b32.xlu0 %v669, 127
      %v678 = vpop.permute.xlu0 %677
      %v679 = vsel %vm353, %v674, %v676
      %v680 = vsel %vm353, %v676, %v678
      %683 = vst [vmem:[#allocation3 + $0x50] sm:$0xff] %v679
      %684 = vst [vmem:[#allocation3 + $0x58] sm:$0xff] %v680
      %v685 = vld [vmem:[#allocation2 + $0x8] sm:$0xff]
      %v686 = vld [vmem:[#allocation2 + $0x10] sm:$0xff]
      %v687 = vld [vmem:[#allocation2 + $0x18] sm:$0xff]
      %v688 = vmul.bf16 %v685, %v414
      %v689 = vmul.bf16 %v686, %v417
      %v690 = vmul.bf16 %v687, %v416
      %694 = vrot.lane.b32.xlu0 %v688, 113
      %v695 = vpop.permute.xlu0 %694
      %696 = vrot.lane.b32.xlu0 %v689, 113
      %v697 = vpop.permute.xlu0 %696
      %698 = vrot.lane.b32.xlu0 %v690, 113
      %v699 = vpop.permute.xlu0 %698
      %v700 = vsel %vm322, %v695, %v697
      %v701 = vsel %vm322, %v697, %v699
      %704 = vst [vmem:[#allocation3 + $0x60] sm:$0xff] %v700
      %705 = vst [vmem:[#allocation3 + $0x68] sm:$0xff] %v701
      %v706 = vld [vmem:[#allocation2 + $0x8] sm:$0xff]
      %v707 = vld [vmem:[#allocation2 + $0x10] sm:$0xff]
      %v708 = vld [vmem:[#allocation2 + $0x18] sm:$0xff]
      %712 = vrot.lane.b32.xlu0 %v706, 112
      %v713 = vpop.permute.xlu0 %712
      %714 = vrot.lane.b32.xlu0 %v707, 112
      %v715 = vpop.permute.xlu0 %714
      %716 = vrot.lane.b32.xlu0 %v708, 112
      %v717 = vpop.permute.xlu0 %716
      %v718 = vsel %vm451, %v713, %v715
      %v719 = vsel %vm451, %v715, %v717
      %722 = vst [vmem:[#allocation3 + $0x70] sm:$0xff] %v718
      %723 = vst [vmem:[#allocation3 + $0x78] sm:$0xff] %v719
      %v724 = vld [vmem:[#allocation2 + $0x8] sm:$0xff]
      %v725 = vld [vmem:[#allocation2 + $0x10] sm:$0xff]
      %v726 = vld [vmem:[#allocation2 + $0x18] sm:$0xff]
      %v727 = vmul.bf16 %v724, %v462
      %v728 = vmul.bf16 %v725, %v465
      %v729 = vmul.bf16 %v726, %v464
      %733 = vrot.lane.b32.xlu0 %v727, 111
      %v734 = vpop.permute.xlu0 %733
      %735 = vrot.lane.b32.xlu0 %v728, 111
      %v736 = vpop.permute.xlu0 %735
      %737 = vrot.lane.b32.xlu0 %v729, 111
      %v738 = vpop.permute.xlu0 %737
      %v739 = vsel %vm270, %v734, %v736
      %v740 = vsel %vm270, %v736, %v738
      %743 = vst [vmem:[#allocation3 + $0x80] sm:$0xff] %v739
      %744 = vst [vmem:[#allocation3 + $0x88] sm:$0xff] %v740
      %v745 = vld [vmem:[%s2] sm:$0xff]
      %v746 = vld [vmem:[%s2 + $0x8] sm:$0xff]
      %v747 = vld [vmem:[#allocation3] sm:$0xff]
      %v748 = vld [vmem:[#allocation3 + $0x8] sm:$0xff]
      %v749 = vld [vmem:[#allocation3 + $0x10] sm:$0xff]
      %v750 = vld [vmem:[#allocation3 + $0x18] sm:$0xff]
      %v751 = vld [vmem:[#allocation3 + $0x20] sm:$0xff]
      %v752 = vld [vmem:[#allocation3 + $0x28] sm:$0xff]
      %v753 = vld [vmem:[#allocation3 + $0x30] sm:$0xff]
      %v754 = vld [vmem:[#allocation3 + $0x38] sm:$0xff]
      %v755 = vld [vmem:[#allocation3 + $0x40] sm:$0xff]
      %v756 = vld [vmem:[#allocation3 + $0x48] sm:$0xff]
      %v757 = vld [vmem:[#allocation3 + $0x50] sm:$0xff]
      %v758 = vld [vmem:[#allocation3 + $0x58] sm:$0xff]
      %v759 = vld [vmem:[#allocation3 + $0x60] sm:$0xff]
      %v760 = vld [vmem:[#allocation3 + $0x68] sm:$0xff]
      %v761 = vld [vmem:[#allocation3 + $0x70] sm:$0xff]
      %v762 = vld [vmem:[#allocation3 + $0x78] sm:$0xff]
      %v763 = vld [vmem:[#allocation3 + $0x80] sm:$0xff]
      %v764 = vld [vmem:[#allocation3 + $0x88] sm:$0xff]
      %v767 = vunpack.c.l.b16 %v745
      %v768 = vunpack.c.h.b16 %v745
      %v769 = vunpack.c.l.b16 %v746
      %v770 = vunpack.c.h.b16 %v746
      %v771 = vpack.c.b16 %v769, %v767
      %v772 = vpack.c.b16 %v770, %v768
      %v775 = vsel %vm516, %v772, 0
      %777 = vmatprep.subr.bf16.mxu0 %v748
      %778 = vmatpush1.bf16.msra.mxu0 %v747
      %779 = vmatprep.subr.bf16.mxu0 %v750
      %780 = vmatpush1.bf16.msra.mxu0 %v749
      %781 = vmatprep.subr.bf16.mxu0 %v752
      %782 = vmatpush1.bf16.msra.mxu0 %v751
      %783 = vmatprep.subr.bf16.mxu0 %v754
      %784 = vmatpush1.bf16.msra.mxu0 %v753
      %785 = vmatprep.subr.bf16.mxu0 %v756
      %786 = vmatpush1.bf16.msra.mxu0 %v755
      %787 = vmatprep.subr.bf16.mxu0 %v758
      %788 = vmatpush1.bf16.msra.mxu0 %v757
      %789 = vmatprep.subr.bf16.mxu0 %v760
      %790 = vmatpush1.bf16.msra.mxu0 %v759
      %791 = vmatprep.subr.bf16.mxu0 %v762
      %792 = vmatpush1.bf16.msra.mxu0 %v761
      %793 = vmatprep.subr.bf16.mxu0 %v764
      %794 = vmatpush1.bf16.msra.mxu0 %v763
      %795 = vmatprep.subr.bf16.mxu0 0
      %796 = vmatpush1.bf16.msra.mxu0 0
      %797 = vmatprep.subr.bf16.mxu0 0
      %798 = vmatpush1.bf16.msra.mxu0 0
      %799 = vmatprep.subr.bf16.mxu0 0
      %800 = vmatpush1.bf16.msra.mxu0 0
      %801 = vmatprep.subr.bf16.mxu0 0
      %802 = vmatpush1.bf16.msra.mxu0 0
      %803 = vmatprep.subr.bf16.mxu0 0
      %804 = vmatpush1.bf16.msra.mxu0 0
      %805 = vmatprep.subr.bf16.mxu0 0
      %806 = vmatpush1.bf16.msra.mxu0 0
      %807 = vmatprep.subr.bf16.mxu0 0
      %808 = vmatpush1.bf16.msra.mxu0 0
      %809 = vmatprep.mubr.bf16.mxu0 %v775
      %810 = vmatmul.mubr.bf16.gmra.mrb[0].mxu0 %v771
      %v811 = vpop.f32.mrb[0].mxu0
      %v812 = vadd.f32 0.0, %v811
      %v813 = vpop.f32.mrb[0].mxu0
      %v814 = vadd.f32 0.0, %v813
      %v815 = vpop.f32.mrb[0].mxu0
      %v816 = vadd.f32 0.0, %v815
      %v817 = vpop.f32.mrb[0].mxu0
      %v818 = vadd.f32 0.0, %v817
      %819 = vdwg.mxu0
      %vm820 = vcmp.ge.f32.partialorder %v812, 0.0
      %vm821 = vcmp.ge.f32.partialorder %v814, 0.0
      %vm822 = vcmp.ge.f32.partialorder %v816, 0.0
      %vm823 = vcmp.ge.f32.partialorder %v818, 0.0
      %v824 = vmul.f32 %v812, 0.1
      %v825 = vmul.f32 %v814, 0.1
      %v826 = vmul.f32 %v816, 0.1
      %v827 = vmul.f32 %v818, 0.1
      %v828 = vsel %vm820, %v812, %v824
      %v829 = vsel %vm821, %v814, %v825
      %v830 = vsel %vm822, %v816, %v826
      %v831 = vsel %vm823, %v818, %v827
      %v832 = vld [vmem:[%s192] sm:$0xff]
      %v833 = vld [vmem:[%s192 + $0x8] sm:$0xff]
      %v834 = vld [vmem:[%s192 + $0x10] sm:$0xff]
      %v835 = vld [vmem:[%s192 + $0x18] sm:$0xff]
      %v836 = vadd.f32 %v832, %v828
      %v837 = vadd.f32 %v833, %v829
      %v838 = vadd.f32 %v834, %v830
      %v839 = vadd.f32 %v835, %v831
      %840 = vst [vmem:[%s197] sm:$0xff] %v836
      %841 = vst [vmem:[%s197 + $0x8] sm:$0xff] %v837
      %842 = vst [vmem:[%s197 + $0x10] sm:$0xff] %v838
      %843 = vst [vmem:[%s197 + $0x18] sm:$0xff] %v839
      %p844 = scmp.lt.s32.totalorder %s15, 1
      %s845 = scalar_select %p844, %s15, 1
      %s846 = smul.addr %s845, 4
      %s847 = smul.addr %s846, 8
      %s848 = scalar_lea.vmem %s4, %s847
      // Predicated region
      $region37: #{residual_block_nonorm.1} parent=35 // pred_check
        %p849 = pneg %p122
      $region38: #{residual_block_nonorm.1} parent=35 // pred_check_branch
        %851 = sbr.rel (%p849) target = $region40
      $region39: #{residual_block_nonorm.1} parent=35 // pred_region
        _
      $region40: #{residual_block_nonorm.1} parent=35 // pred_fallthru
        _
    $region36: #{residual_block_nonorm.1} parent=5 // pred_fallthru
      _
    %p852 = scmp.le.s32.totalorder 2, %s10
    // Predicated region
    $region41: #{residual_block_nonorm.1} parent=5 // pred_check
      %p853 = pneg %p852
    $region42: #{residual_block_nonorm.1} parent=5 // pred_check_branch
      %855 = sbr.rel (%p853) target = $region44
    $region43: #{residual_block_nonorm.1} parent=5 // pred_region
      %s856 = ssub.s32 %s10, 2
      // Predicated region
      $region45: #{residual_block_nonorm.1} parent=43 // pred_check
        %p857 = pneg %p128
      $region46: #{residual_block_nonorm.1} parent=43 // pred_check_branch
        %859 = sbr.rel (%p857) target = $region48
      $region47: #{residual_block_nonorm.1} parent=43 // pred_region
        %p860 = scmp.lt.s32.totalorder %s16, 1
        %s861 = scalar_select %p860, %s16, 1
        %s862 = smul.addr %s861, 4
        %s863 = smul.addr %s862, 8
        %s864 = scalar_lea.vmem %s4, %s863
      $region48: #{residual_block_nonorm.1} parent=43 // pred_fallthru
        _
    $region44: #{residual_block_nonorm.1} parent=5 // pred_fallthru
      _
  $region6: #{residual_block_nonorm.1} parent=0 // loop_footer
    %s14 = sadd.s32 1, %s10
  $region7: #{residual_block_nonorm.1} parent=0 // loop_footer_branch
    %9 = sbr.rel target = $region3
  $region8: #{residual_block_nonorm.1} parent=0 // loop_exit
    _

</llo_original>
